<compile_context>
chip_gen: v7x
topology: tpu7x:2x2x1
jax: 0.10.0
libtpu: 0.0.40
codegen_flags: <defaults>
</compile_context>

<pallas_src>
import functools

import numpy as np
import jax
import jax.numpy as jnp
from jax.experimental import pallas as pl
from jax.experimental.pallas import tpu as pltpu

N_HARMONIC = 10
APPEND_INPUT = True

# Row tile: 2048 * 189 * 4B ~= 1.5 MiB output block; with the f32 intermediates
# (embed/sin/cos, ~2 MiB each at TB=2048) and double-buffered I/O blocks this
# stays comfortably under the scoped-VMEM default on every generation
# (v5e 16 MiB, v6e 32 MiB, v7x 32 MiB scoped / 64 MiB physical).
_MAX_ROWS_PER_TILE = 2048


def _round_up(v: int, m: int) -> int:
    return ((v + m - 1) // m) * m


def _pose_embed_kernel(x_ref, scatter_ref, out_ref, *, dn: int, append_input: bool):
    # x_ref       : (TB, D)     pose encodings (row tile), input dtype
    # scatter_ref : (D, D*N)    bf16 scatter[d, d*N+k] = 2**k, else 0 (exact in bf16)
    # out_ref     : (TB, OUT)   OUT = D*(2N+1) fused [sin | cos | x] output
    x_f32 = x_ref[...].astype(jnp.float32)       # compute in f32 on every chip
    scatter = scatter_ref[...]                   # bf16, exact powers of two

    # Exact 3-term bf16 split of x: hi/mid/lo residuals cover the full f32
    # mantissa.  Each bf16 x (power-of-two bf16) product is exact in the f32
    # accumulator, so the summed result equals x * 2**k up to the (tiny, <=1 ulp
    # of the lowest split) decomposition error — far inside the 1e-4 tolerance.
    x_hi = x_f32.astype(jnp.bfloat16)
    r1 = x_f32 - x_hi.astype(jnp.float32)
    x_mid = r1.astype(jnp.bfloat16)
    r2 = r1 - x_mid.astype(jnp.float32)
    x_lo = r2.astype(jnp.bfloat16)

    embed = (
        jnp.dot(x_hi, scatter, preferred_element_type=jnp.float32)
        + jnp.dot(x_mid, scatter, preferred_element_type=jnp.float32)
        + jnp.dot(x_lo, scatter, preferred_element_type=jnp.float32)
    )                                            # (TB, D*N) d-major / harmonic-minor

    # Direct slice stores (masked vst) instead of an in-register lane concat:
    # avoids XLU rotates at the non-128-aligned offsets 90/180 and a 4th slab.
    out_ref[:, :dn] = jnp.sin(embed).astype(out_ref.dtype)
    out_ref[:, dn:2 * dn] = jnp.cos(embed).astype(out_ref.dtype)
    if append_input:
        out_ref[:, 2 * dn:] = x_f32.astype(out_ref.dtype)


def pose_embedding(pose_encoding: jax.Array,
                   n_harmonic_functions: int = N_HARMONIC,
                   append_input: bool = APPEND_INPUT) -> jax.Array:
    """Forward pass of PoseEmbedding. (..., D) -> (..., D*(2N + append_input))."""
    x = pose_encoding
    orig_shape = x.shape
    D = orig_shape[-1]
    B = int(np.prod(orig_shape[:-1])) if len(orig_shape) > 1 else 1
    n = int(n_harmonic_functions)
    dn = D * n
    out_dim = 2 * dn + (D if append_input else 0)

    xf = x.reshape(B, D)

    # Host-built, exact scatter-and-scale matrix (compile-time constant data).
    # Entries are 0 and 2^0..2^(n-1): exactly representable in bf16, so the bf16
    # cast loses nothing and the in-kernel dots stay exact per term.
    scat_np = np.zeros((D, dn), dtype=np.float32)
    freqs = (2.0 ** np.arange(n)).astype(np.float32)      # exact powers of two
    for d in range(D):
        scat_np[d, d * n:(d + 1) * n] = freqs
    scatter = jnp.asarray(scat_np, dtype=jnp.bfloat16)

    # Row tiling:
    #  - tiny batches: one full-array block (block == full dim satisfies (8,128)),
    #  - otherwise aim for >= 2 blocks so the "parallel" grid axis can be split
    #    across v7x's two TensorCores, capped at _MAX_ROWS_PER_TILE for VMEM.
    # Pallas masks the final partial block.
    if B <= 8:
        tb = B
    else:
        tb = min(_round_up((B + 1) // 2, 8), _MAX_ROWS_PER_TILE)
    grid = (pl.cdiv(B, tb),)

    kernel = functools.partial(_pose_embed_kernel, dn=dn, append_input=append_input)

    out = pl.pallas_call(
        kernel,
        grid=grid,
        in_specs=[
            pl.BlockSpec((tb, D), lambda i: (i, 0)),
            pl.BlockSpec((D, dn), lambda i: (0, 0)),   # constant block -> fetched once
        ],
        out_specs=pl.BlockSpec((tb, out_dim), lambda i: (i, 0)),
        out_shape=jax.ShapeDtypeStruct((B, out_dim), x.dtype),
        compiler_params=pltpu.CompilerParams(
            dimension_semantics=("parallel",),          # independent rows: lets v7x's 2 TCs split
        ),
    )(xf, scatter)

    return out.reshape(*orig_shape[:-1], out_dim)


def _reference(pose_encoding, n=N_HARMONIC, append_input=APPEND_INPUT):
    """Pure-JAX reference mirroring the PyTorch HarmonicEmbedding forward."""
    freqs = jnp.asarray(2.0 ** np.arange(n), dtype=pose_encoding.dtype)
    embed = (pose_encoding[..., None] * freqs).reshape(
        *pose_encoding.shape[:-1], -1
    )
    parts = [jnp.sin(embed), jnp.cos(embed)]
    if append_input:
        parts.append(pose_encoding)
    return jnp.concatenate(parts, axis=-1)


if __name__ == "__main__":
    key = jax.random.PRNGKey(0)
    # PoseEmbedding(target_dim=9): batch=2, seq=8, pose-encoding dim=9.
    target_dim = 9
    pose_encoding = jax.random.normal(key, (2, 8, target_dim), dtype=jnp.float32)

    out = jax.block_until_ready(pose_embedding(pose_encoding))

    expected_out_dim = target_dim * (2 * N_HARMONIC + 1)  # 189
    assert out.shape == (2, 8, expected_out_dim), out.shape

    ref = _reference(pose_encoding)
    np.testing.assert_allclose(np.asarray(out), np.asarray(ref), atol=1e-4, rtol=1e-4)

    print("KERNEL_OK")
</pallas_src>

<mosaic_0001>
module attributes {stable_mosaic.version = 11 : i64} {
  func.func @_pose_embed_kernel(%arg0: i32, %arg1: memref<8x9xf32, #tpu.memory_space<vmem>>, %arg2: memref<9x90xbf16, #tpu.memory_space<vmem>>, %arg3: memref<8x189xf32, #tpu.memory_space<vmem>>) attributes {dimension_semantics = [#tpu.dimension_semantics<parallel>], iteration_bounds = array<i64: 2>, scalar_prefetch = 0 : i64, scratch_operands = 0 : i64, tpu.core_type = #tpu.core_type<tc>, window_params = [{transform_indices = @transform_0, window_bounds = array<i64: 8, 9>}, {pipeline_mode = #tpu.pipeline_mode<synchronous>, transform_indices = @transform_1, window_bounds = array<i64: 9, 90>}, {transform_indices = @transform_2, window_bounds = array<i64: 8, 189>}]} {
    %c0 = arith.constant 0 : index
    %c0_0 = arith.constant 0 : index
    %0 = vector.load %arg1[%c0, %c0_0] : memref<8x9xf32, #tpu.memory_space<vmem>>, vector<8x9xf32>
    %c0_1 = arith.constant 0 : index
    %c0_2 = arith.constant 0 : index
    %1 = vector.load %arg2[%c0_1, %c0_2] : memref<9x90xbf16, #tpu.memory_space<vmem>>, vector<9x90xbf16>
    %2 = arith.truncf %0 : vector<8x9xf32> to vector<8x9xbf16>
    %3 = arith.extf %2 : vector<8x9xbf16> to vector<8x9xf32>
    %4 = arith.subf %0, %3 : vector<8x9xf32>
    %5 = arith.truncf %4 : vector<8x9xf32> to vector<8x9xbf16>
    %6 = arith.extf %5 : vector<8x9xbf16> to vector<8x9xf32>
    %7 = arith.subf %4, %6 : vector<8x9xf32>
    %8 = arith.truncf %7 : vector<8x9xf32> to vector<8x9xbf16>
    %cst = arith.constant dense<0.000000e+00> : vector<8x90xf32>
    %9 = tpu.matmul %2, %1, %cst {dimension_numbers = #tpu.dot_dimension_numbers<[1], [0], [0], [1], [0, 0, 1, 1], [], []>} : vector<8x9xbf16>, vector<9x90xbf16>, vector<8x90xf32> -> vector<8x90xf32>
    %cst_3 = arith.constant dense<0.000000e+00> : vector<8x90xf32>
    %10 = tpu.matmul %5, %1, %cst_3 {dimension_numbers = #tpu.dot_dimension_numbers<[1], [0], [0], [1], [0, 0, 1, 1], [], []>} : vector<8x9xbf16>, vector<9x90xbf16>, vector<8x90xf32> -> vector<8x90xf32>
    %11 = arith.addf %9, %10 : vector<8x90xf32>
    %cst_4 = arith.constant dense<0.000000e+00> : vector<8x90xf32>
    %12 = tpu.matmul %8, %1, %cst_4 {dimension_numbers = #tpu.dot_dimension_numbers<[1], [0], [0], [1], [0, 0, 1, 1], [], []>} : vector<8x9xbf16>, vector<9x90xbf16>, vector<8x90xf32> -> vector<8x90xf32>
    %13 = arith.addf %11, %12 : vector<8x90xf32>
    %14 = math.sin %13 : vector<8x90xf32>
    %c0_5 = arith.constant 0 : index
    %c0_6 = arith.constant 0 : index
    %15 = vector.load %arg3[%c0_5, %c0_6] : memref<8x189xf32, #tpu.memory_space<vmem>>, vector<8x90xf32>
    tpu.vector_store %arg3[%c0_5, %c0_6], %14 {strides = array<i32>} : memref<8x189xf32, #tpu.memory_space<vmem>>, vector<8x90xf32>,
    %16 = math.cos %13 : vector<8x90xf32>
    %c0_7 = arith.constant 0 : index
    %c90 = arith.constant 90 : index
    %17 = vector.load %arg3[%c0_7, %c90] : memref<8x189xf32, #tpu.memory_space<vmem>>, vector<8x90xf32>
    tpu.vector_store %arg3[%c0_7, %c90], %16 {strides = array<i32>} : memref<8x189xf32, #tpu.memory_space<vmem>>, vector<8x90xf32>,
    %c0_8 = arith.constant 0 : index
    %c180 = arith.constant 180 : index
    %18 = vector.load %arg3[%c0_8, %c180] : memref<8x189xf32, #tpu.memory_space<vmem>>, vector<8x9xf32>
    tpu.vector_store %arg3[%c0_8, %c180], %0 {strides = array<i32>} : memref<8x189xf32, #tpu.memory_space<vmem>>, vector<8x9xf32>,
    return
  }
  func.func @transform_0(%arg0: i32) -> (i32, i32) {
    %c0_i32 = arith.constant 0 : i32
    %c0_i32_0 = arith.constant 0 : i32
    return %arg0, %c0_i32 : i32, i32
  }
  func.func @transform_1(%arg0: i32) -> (i32, i32) {
    %c0_i32 = arith.constant 0 : i32
    %c0_i32_0 = arith.constant 0 : i32
    %c0_i32_1 = arith.constant 0 : i32
    return %c0_i32, %c0_i32_0 : i32, i32
  }
  func.func @transform_2(%arg0: i32) -> (i32, i32) {
    %c0_i32 = arith.constant 0 : i32
    %c0_i32_0 = arith.constant 0 : i32
    return %arg0, %c0_i32 : i32, i32
  }
}

</mosaic_0001>

<llo_original>
// kernel: tpu_custom_call.1
$region0: #{tpu_custom_call.1}
  #allocation0 [shape = 'u32[]', space=smem, size = 0x4, offset = 0x4, fixed_abs, tag = 'smem constant byte address 0x4 - core index']
  #allocation1 [shape = 'u32[144,128]{1,0:T(1,128)}', space=vmem, size = 0x12000, scoped, tag = 'internal scratch']
  %s0 = inlined_call_operand.hbm [shape: f32[16,9], index: 0, kind: input, shape index: {}]
  %s1 = inlined_call_operand.hbm [shape: bf16[9,90], index: 1, kind: input, shape index: {}]
  %s2 = inlined_call_operand.hbm [shape: f32[16,189], index: 2, kind: output, shape index: {}]
  %s3 = sld [smem:[#allocation0]]
  $region49: #{tpu_custom_call.1} parent=0
    _
  %s5 = ssub.s32 1, %s3
  %s6 = scalar_select 0, %s5, %s3
  $region1: #{tpu_custom_call.1} parent=0
    #allocation2 [shape = 'u8[8192]{0}', space=vmem, size = 0x2000, scoped, tag = 'input window, operand 0']
    #allocation3 [shape = 's32[2]{0}', space=sflag, size = 0x8, scoped, tag = 'scoped memory for tpu_custom_call.1']
    #allocation4 [shape = 's32[2]{0}', space=sflag, size = 0x8, scoped, tag = 'scoped memory for tpu_custom_call.1']
    #allocation5 [shape = 'u8[4096]{0}', space=vmem, size = 0x1000, scoped, tag = 'input window, operand 1, single buffered']
    #allocation6 [shape = 's32[1]{0}', space=sflag, size = 0x4, scoped, tag = 'scoped memory for tpu_custom_call.1']
    #allocation7 [shape = 'u8[16384]{0}', space=vmem, size = 0x4000, scoped, tag = 'output window, operand 0']
    %7 = vsyncpa [#allocation3], 0
    %s8 = scalar_lea.sflag [#allocation3], 1
    %9 = vsyncpa %s8, 0
    %10 = vsyncpa [#allocation6], 0
    %11 = vsyncpa [#allocation4], 0
    %s12 = scalar_lea.sflag [#allocation4], 1
    %13 = vsyncpa %s12, 0
    loop: start=0, step=1, limit=4
    $region2: #{tpu_custom_call.1} parent=1 // loop_pre_header
      _
    $region3: #{tpu_custom_call.1} parent=1 // loop_header
      %s15 = sphi 0, %s19
      %p16 = scmp.ge.s32.totalorder %s15, 4
      %s25 = sphi 0, %s27
      %s28 = sphi 0, %s25
      %s29 = sphi 0, %s28
      %s45 = sphi 0, %s29
      %s49 = sphi 0, %s49
      %s51 = sphi 0, %s49
      %s52 = sphi 0, %s51
      %s66 = sphi 0, %s52
      %s72 = sphi 0, %s74
      %s75 = sphi 0, %s72
      %s76 = sphi 0, %s75
      %s92 = sphi 0, %s76
    $region4: #{tpu_custom_call.1} parent=1 // loop_header_branch
      %18 = sbr.rel (%p16) target = $region8
    $region5: #{tpu_custom_call.1} parent=1 // loop_body
      %s20 = ssub.s32 %s15, 1
      %s21 = ssub.s32 %s15, 2
      %s22 = sadd.s32 %s15, 1
      %s23 = ssub.s32 %s15, %s22
      %p24 = scmp.eq.s32.totalorder %s23, 0
      %s26 = sadd.s32 %s25, 1
      %s27 = scalar_select %p24, %s25, %s26
      %p30 = pneg %p24
      %p31 = scmp.eq.s32.totalorder %s15, 1
      %p32 = por %p30, %p31
      %p33 = scmp.ne.s32.totalorder %s25, %s28
      %p34 = scmp.eq.s32.totalorder %s15, 0
      %p35 = por %p33, %p34
      %p36 = scmp.ne.s32.totalorder %s25, %s28
      %p37 = scmp.eq.s32.totalorder %s20, 1
      %p38 = por %p36, %p37
      %p39 = scmp.ne.s32.totalorder %s28, %s29
      %p40 = scmp.eq.s32.totalorder %s20, 0
      %p41 = por %p39, %p40
      %p42 = scmp.ne.s32.totalorder %s28, %s29
      %p43 = scmp.eq.s32.totalorder %s21, 1
      %p44 = por %p42, %p43
      %p46 = scmp.ne.s32.totalorder %s29, %s45
      %p47 = scmp.eq.s32.totalorder %s21, 0
      %p48 = por %p46, %p47
      %s50 = sadd.s32 %s49, 1
      %p53 = scmp.eq.s32.totalorder %s15, 1
      %p54 = scmp.ne.s32.totalorder %s49, %s51
      %p55 = scmp.eq.s32.totalorder %s15, 0
      %p56 = por %p54, %p55
      %p57 = scmp.ne.s32.totalorder %s49, %s51
      %p58 = scmp.eq.s32.totalorder %s20, 1
      %p59 = por %p57, %p58
      %p60 = scmp.ne.s32.totalorder %s51, %s52
      %p61 = scmp.eq.s32.totalorder %s20, 0
      %p62 = por %p60, %p61
      %p63 = scmp.ne.s32.totalorder %s51, %s52
      %p64 = scmp.eq.s32.totalorder %s21, 1
      %p65 = por %p63, %p64
      %p67 = scmp.ne.s32.totalorder %s52, %s66
      %p68 = scmp.eq.s32.totalorder %s21, 0
      %p69 = por %p67, %p68
      %s70 = ssub.s32 %s15, %s22
      %p71 = scmp.eq.s32.totalorder %s70, 0
      %s73 = sadd.s32 %s72, 1
      %s74 = scalar_select %p71, %s72, %s73
      %p77 = pneg %p71
      %p78 = scmp.eq.s32.totalorder %s15, 1
      %p79 = por %p77, %p78
      %p80 = scmp.ne.s32.totalorder %s72, %s75
      %p81 = scmp.eq.s32.totalorder %s15, 0
      %p82 = por %p80, %p81
      %p83 = scmp.ne.s32.totalorder %s72, %s75
      %p84 = scmp.eq.s32.totalorder %s20, 1
      %p85 = por %p83, %p84
      %p86 = scmp.ne.s32.totalorder %s75, %s76
      %p87 = scmp.eq.s32.totalorder %s20, 0
      %p88 = por %p86, %p87
      %p89 = scmp.ne.s32.totalorder %s75, %s76
      %p90 = scmp.eq.s32.totalorder %s21, 1
      %p91 = por %p89, %p90
      %p93 = scmp.ne.s32.totalorder %s76, %s92
      %p94 = scmp.eq.s32.totalorder %s21, 0
      %p95 = por %p93, %p94
      %p96 = scmp.le.s32.totalorder 1, %s15
      %p97 = scmp.lt.s32.totalorder %s15, 3
      %p98 = pnand %p96, %p97
      %p99 = pneg %p98
      // Predicated region
      $region9: #{tpu_custom_call.1} parent=5 // pred_check
        _
      $region10: #{tpu_custom_call.1} parent=5 // pred_check_branch
        %101 = sbr.rel (%p98) target = $region12
      $region11: #{tpu_custom_call.1} parent=5 // pred_region
        %s102 = ssub.s32 %s15, 1
        // Predicated region
        $region13: #{tpu_custom_call.1} parent=11 // pred_check
          %p103 = pneg %p62
        $region14: #{tpu_custom_call.1} parent=11 // pred_check_branch
          %105 = sbr.rel (%p103) target = $region16
        $region15: #{tpu_custom_call.1} parent=11 // pred_region
          %s107 = ssub.s32 128, 128
          %108 = vsyncadd [#allocation6], %s107
          %s109 = sshll.u32 [#allocation5], 4
          %s110 = int_to_ptr.vmem [resolvable:$true] %s109
          %115 = dma.hbm_to_vmem [thread:$0]  %s1, 128, %s110, [#allocation6], 64, 64, 4
        $region16: #{tpu_custom_call.1} parent=11 // pred_fallthru
          _
      $region12: #{tpu_custom_call.1} parent=5 // pred_fallthru
        _
      %p116 = scmp.lt.s32.totalorder %s15, 2
      // Predicated region
      $region17: #{tpu_custom_call.1} parent=5 // pred_check
        %p117 = pneg %p116
      $region18: #{tpu_custom_call.1} parent=5 // pred_check_branch
        %119 = sbr.rel (%p117) target = $region20
      $region19: #{tpu_custom_call.1} parent=5 // pred_region
        // Predicated region
        $region21: #{tpu_custom_call.1} parent=19 // pred_check
          %p120 = pneg %p35
        $region22: #{tpu_custom_call.1} parent=19 // pred_check_branch
          %122 = sbr.rel (%p120) target = $region24
        $region23: #{tpu_custom_call.1} parent=19 // pred_region
          %s123 = sand.u32 %s25, 1
          %s124 = scalar_lea.sflag [#allocation3], %s123
          %s125 = sand.u32 %s25, 1
          %s126 = smul.addr %s125, 8
          %s127 = scalar_lea.vmem [#allocation2], %s126
          %s129 = ssub.s32 128, 128
          %130 = vsyncadd %s124, %s129
          %s131 = smul.addr %s15, 128
          %s132 = scalar_lea.hbm %s0, %s131
          %s134 = sshll.u32 %s127, 4
          %s135 = int_to_ptr.vmem [resolvable:$true] %s134
          %137 = dma.hbm_to_vmem [thread:$0]  %s132, 128, %s135, %s124
        $region24: #{tpu_custom_call.1} parent=19 // pred_fallthru
          _
      $region20: #{tpu_custom_call.1} parent=5 // pred_fallthru
        _
      %p138 = scmp.le.s32.totalorder 1, %s15
      %p139 = scmp.lt.s32.totalorder %s15, 3
      %p140 = pnand %p138, %p139
      %p141 = pneg %p140
      // Predicated region
      $region25: #{tpu_custom_call.1} parent=5 // pred_check
        _
      $region26: #{tpu_custom_call.1} parent=5 // pred_check_branch
        %143 = sbr.rel (%p140) target = $region28
      $region27: #{tpu_custom_call.1} parent=5 // pred_region
        %s144 = ssub.s32 %s15, 1
        %s145 = sand.u32 %s28, 1
        %s146 = scalar_lea.sflag [#allocation3], %s145
        %s147 = sand.u32 %s28, 1
        %s148 = smul.addr %s147, 8
        %s149 = scalar_lea.vmem [#allocation2], %s148
        // Predicated region
        $region29: #{tpu_custom_call.1} parent=27 // pred_check
          %p150 = pneg %p41
        $region30: #{tpu_custom_call.1} parent=27 // pred_check_branch
          %152 = sbr.rel (%p150) target = $region32
        $region31: #{tpu_custom_call.1} parent=27 // pred_region
          %153 = dma.done %s146, 128
        $region32: #{tpu_custom_call.1} parent=27 // pred_fallthru
          _
        // Predicated region
        $region33: #{tpu_custom_call.1} parent=27 // pred_check
          %p154 = pneg %p62
        $region34: #{tpu_custom_call.1} parent=27 // pred_check_branch
          %156 = sbr.rel (%p154) target = $region36
        $region35: #{tpu_custom_call.1} parent=27 // pred_region
          %157 = dma.done [#allocation6], 128
        $region36: #{tpu_custom_call.1} parent=27 // pred_fallthru
          _
        %s158 = sand.u32 %s28, 1
        %s159 = scalar_lea.sflag [#allocation3], %s158
        %s160 = sand.u32 %s28, 1
        %s161 = smul.addr %s160, 8
        %s162 = scalar_lea.vmem [#allocation2], %s161
        %p163 = pneg %p41
        %p164 = pneg %p38
        %p165 = pneg %p62
        %p166 = pneg %p59
        %p167 = pneg %p88
        %p168 = pneg %p85
        %s169 = sand.u32 %s75, 1
        %s170 = scalar_lea.sflag [#allocation4], %s169
        %s171 = sand.u32 %s75, 1
        %s172 = smul.addr %s171, 16
        %s173 = scalar_lea.vmem [#allocation7], %s172
        %v175 = vld [vmem:[%s149] sm:$0xff]
        %v176 = vld [vmem:[#allocation5] sm:$0xf]
        %v177 = vld [vmem:[#allocation5 + $0x4] sm:$0x1]
        %v178 = vpack.c.bf16 %v175, %v175
        %v179 = vunpack.c.l.bf16 %v178
        %v180 = vsub.f32 %v175, %v179
        %v181 = vpack.c.bf16 %v180, %v180
        %v182 = vunpack.c.l.bf16 %v181
        %v183 = vsub.f32 %v180, %v182
        %v184 = vpack.c.bf16 %v183, %v183
        %v187 = vunpack.c.l.b16 %v176
        %v188 = vunpack.c.l.b16 %v177
        %v189 = vpack.c.b16 %v188, %v187
        %vm190 = vcmask 72704
        %v192 = vsel %vm190, %v181, 0
        %vm194 = vcmask 1043456
        %vm195 = vcmask 1044480
        %v196 = vsel %vm194, 4294967295, 65535
        %v197 = vsel %vm195, %v196, 0
        %v199 = vand.u32 %v189, %v197
        %201 = vmatprep.subr.bf16.mxu0 0
        %202 = vmatpush1.bf16.msra.mxu0 %v199
        %203 = vmatprep.subr.bf16.mxu0 0
        %204 = vmatpush1.bf16.msra.mxu0 0
        %205 = vmatprep.subr.bf16.mxu0 0
        %206 = vmatpush1.bf16.msra.mxu0 0
        %207 = vmatprep.subr.bf16.mxu0 0
        %208 = vmatpush1.bf16.msra.mxu0 0
        %209 = vmatprep.subr.bf16.mxu0 0
        %210 = vmatpush1.bf16.msra.mxu0 0
        %211 = vmatprep.subr.bf16.mxu0 0
        %212 = vmatpush1.bf16.msra.mxu0 0
        %213 = vmatprep.subr.bf16.mxu0 0
        %214 = vmatpush1.bf16.msra.mxu0 0
        %215 = vmatprep.subr.bf16.mxu0 0
        %216 = vmatpush1.bf16.msra.mxu0 0
        %217 = vmatprep.subr.bf16.mxu0 0
        %218 = vmatpush1.bf16.msra.mxu0 0
        %219 = vmatprep.subr.bf16.mxu0 0
        %220 = vmatpush1.bf16.msra.mxu0 0
        %221 = vmatprep.subr.bf16.mxu0 0
        %222 = vmatpush1.bf16.msra.mxu0 0
        %223 = vmatprep.subr.bf16.mxu0 0
        %224 = vmatpush1.bf16.msra.mxu0 0
        %225 = vmatprep.subr.bf16.mxu0 0
        %226 = vmatpush1.bf16.msra.mxu0 0
        %227 = vmatprep.subr.bf16.mxu0 0
        %228 = vmatpush1.bf16.msra.mxu0 0
        %229 = vmatprep.subr.bf16.mxu0 0
        %230 = vmatpush1.bf16.msra.mxu0 0
        %231 = vmatprep.subr.bf16.mxu0 0
        %232 = vmatpush1.bf16.msra.mxu0 0
        %233 = vmatprep.mubr.bf16.mxu0 0
        %234 = vmatmul.mubr.bf16.gmra.mrb[0].mxu0 %v192
        %v235 = vpop.f32.mrb[0].mxu0
        %v236 = vadd.f32 0.0, %v235
        %v237 = vpop.f32.mrb[0].mxu0
        %v238 = vpop.f32.mrb[0].mxu0
        %v239 = vpop.f32.mrb[0].mxu0
        %240 = vdwg.mxu0
        %v242 = vsel %vm190, %v178, 0
        %244 = vmatprep.subr.bf16.mxu0 0
        %245 = vmatpush1.bf16.msra.mxu0 %v199
        %246 = vmatprep.subr.bf16.mxu0 0
        %247 = vmatpush1.bf16.msra.mxu0 0
        %248 = vmatprep.subr.bf16.mxu0 0
        %249 = vmatpush1.bf16.msra.mxu0 0
        %250 = vmatprep.subr.bf16.mxu0 0
        %251 = vmatpush1.bf16.msra.mxu0 0
        %252 = vmatprep.subr.bf16.mxu0 0
        %253 = vmatpush1.bf16.msra.mxu0 0
        %254 = vmatprep.subr.bf16.mxu0 0
        %255 = vmatpush1.bf16.msra.mxu0 0
        %256 = vmatprep.subr.bf16.mxu0 0
        %257 = vmatpush1.bf16.msra.mxu0 0
        %258 = vmatprep.subr.bf16.mxu0 0
        %259 = vmatpush1.bf16.msra.mxu0 0
        %260 = vmatprep.subr.bf16.mxu0 0
        %261 = vmatpush1.bf16.msra.mxu0 0
        %262 = vmatprep.subr.bf16.mxu0 0
        %263 = vmatpush1.bf16.msra.mxu0 0
        %264 = vmatprep.subr.bf16.mxu0 0
        %265 = vmatpush1.bf16.msra.mxu0 0
        %266 = vmatprep.subr.bf16.mxu0 0
        %267 = vmatpush1.bf16.msra.mxu0 0
        %268 = vmatprep.subr.bf16.mxu0 0
        %269 = vmatpush1.bf16.msra.mxu0 0
        %270 = vmatprep.subr.bf16.mxu0 0
        %271 = vmatpush1.bf16.msra.mxu0 0
        %272 = vmatprep.subr.bf16.mxu0 0
        %273 = vmatpush1.bf16.msra.mxu0 0
        %274 = vmatprep.subr.bf16.mxu0 0
        %275 = vmatpush1.bf16.msra.mxu0 0
        %276 = vmatprep.mubr.bf16.mxu0 0
        %277 = vmatmul.mubr.bf16.gmra.mrb[0].mxu0 %v242
        %v278 = vpop.f32.mrb[0].mxu0
        %v279 = vadd.f32 %v236, %v278
        %v280 = vpop.f32.mrb[0].mxu0
        %v281 = vpop.f32.mrb[0].mxu0
        %v282 = vpop.f32.mrb[0].mxu0
        %283 = vdwg.mxu0
        %v285 = vsel %vm190, %v184, 0
        %287 = vmatprep.subr.bf16.mxu0 0
        %288 = vmatpush1.bf16.msra.mxu0 %v199
        %289 = vmatprep.subr.bf16.mxu0 0
        %290 = vmatpush1.bf16.msra.mxu0 0
        %291 = vmatprep.subr.bf16.mxu0 0
        %292 = vmatpush1.bf16.msra.mxu0 0
        %293 = vmatprep.subr.bf16.mxu0 0
        %294 = vmatpush1.bf16.msra.mxu0 0
        %295 = vmatprep.subr.bf16.mxu0 0
        %296 = vmatpush1.bf16.msra.mxu0 0
        %297 = vmatprep.subr.bf16.mxu0 0
        %298 = vmatpush1.bf16.msra.mxu0 0
        %299 = vmatprep.subr.bf16.mxu0 0
        %300 = vmatpush1.bf16.msra.mxu0 0
        %301 = vmatprep.subr.bf16.mxu0 0
        %302 = vmatpush1.bf16.msra.mxu0 0
        %303 = vmatprep.subr.bf16.mxu0 0
        %304 = vmatpush1.bf16.msra.mxu0 0
        %305 = vmatprep.subr.bf16.mxu0 0
        %306 = vmatpush1.bf16.msra.mxu0 0
        %307 = vmatprep.subr.bf16.mxu0 0
        %308 = vmatpush1.bf16.msra.mxu0 0
        %309 = vmatprep.subr.bf16.mxu0 0
        %310 = vmatpush1.bf16.msra.mxu0 0
        %311 = vmatprep.subr.bf16.mxu0 0
        %312 = vmatpush1.bf16.msra.mxu0 0
        %313 = vmatprep.subr.bf16.mxu0 0
        %314 = vmatpush1.bf16.msra.mxu0 0
        %315 = vmatprep.subr.bf16.mxu0 0
        %316 = vmatpush1.bf16.msra.mxu0 0
        %317 = vmatprep.subr.bf16.mxu0 0
        %318 = vmatpush1.bf16.msra.mxu0 0
        %319 = vmatprep.mubr.bf16.mxu0 0
        %320 = vmatmul.mubr.bf16.gmra.mrb[0].mxu0 %v285
        %v321 = vpop.f32.mrb[0].mxu0
        %v322 = vadd.f32 0.0, %v321
        %v323 = vpop.f32.mrb[0].mxu0
        %v324 = vpop.f32.mrb[0].mxu0
        %v325 = vpop.f32.mrb[0].mxu0
        %326 = vdwg.mxu0
        %v327 = vadd.f32 %v279, %v322
        %v328 = vand.u32 2147483647, %v327
        %vm329 = vcmp.le.f32.partialorder %v328, 0.7853982
        %vm330 = vcmp.lt.s32.totalorder %v327, 0
        %v331 = vand.u32 %v327, 2139095040
        %v332 = vshrl.u32 %v331, 23
        %v333 = vsub.s32 %v332, 127
        %v334 = vand.u32 2147483647, %v327
        %v335 = vand.u32 %v334, 8388607
        %v336 = vor.u32 %v335, 8388608
        %v337 = vsub.s32 0, %v336
        %v338 = vadd.s32 %v333, 1
        %vm339 = vcmp.gt.s32.totalorder %v338, 0
        %v340 = vsel %vm339, %v338, 0
        %v341 = vshrl.u32 %v340, 5
        %v342 = vand.u32 %v340, 31
        %v343 = vsub.s32 32, %v342
        %v344 = vshrl.u32 683565275, %v343
        %v345 = vshll.u32 683565275, %v342
        %v346 = vshrl.u32 2475754826, %v343
        %v347 = vor.u32 %v345, %v346
        %v348 = vshll.u32 2475754826, %v342
        %v349 = vshrl.u32 2131351028, %v343
        %v350 = vor.u32 %v348, %v349
        %v351 = vshll.u32 2131351028, %v342
        %v352 = vshrl.u32 2102212464, %v343
        %v353 = vor.u32 %v351, %v352
        %v354 = vshll.u32 2102212464, %v342
        %v355 = vshrl.u32 920167782, %v343
        %v356 = vor.u32 %v354, %v355
        %v357 = vshll.u32 920167782, %v342
        %v358 = vshrl.u32 1326507024, %v343
        %v359 = vor.u32 %v357, %v358
        %vm360 = vcmp.lt.s32.totalorder %v341, 1
        %vm361 = vcmp.lt.s32.totalorder %v341, 2
        %vm362 = vcmp.lt.s32.totalorder %v341, 3
        %vm363 = vcmp.lt.s32.totalorder %v341, 4
        %v364 = vsel %vm360, %v344, %v347
        %v365 = vsel %vm363, %v353, 2102212464
        %v366 = vsel %vm362, %v350, %v365
        %v367 = vsel %vm361, %v364, %v366
        %v368 = vsel %vm360, %v347, %v350
        %v369 = vsel %vm363, %v356, 920167782
        %v370 = vsel %vm362, %v353, %v369
        %v371 = vsel %vm361, %v368, %v370
        %v372 = vsel %vm360, %v350, %v353
        %v373 = vsel %vm363, %v359, 1326507024
        %v374 = vsel %vm362, %v356, %v373
        %v375 = vsel %vm361, %v372, %v374
        %v376 = vshll.u32 %v336, 8
        %v377 = vmul.u32.u64.compose %v376, %v375
        %v378 = vextract.low.u32 %v377
        %v379 = vextract.high.u32 %v377
        %v380 = vmul.u32.u64.compose %v376, %v371
        %v381 = vextract.low.u32 %v380
        %v382 = vextract.high.u32 %v380
        %v383 = vmul.u32 %v376, %v367
        %v384 = vadd.s32 %v379, %v381
        %vm385 = vc.u32 %v379, %v381
        %v386 = vadd.s32 %v382, 1
        %v387 = vsel %vm385, %v386, %v382
        %v388 = vadd.s32 %v383, %v387
        %v389 = vadd.s32 %v388, 536870912
        %v390 = vshrl.u32 %v389, 30
        %v391 = vshll.u32 %v390, 30
        %v392 = vsub.s32 %v388, %v391
        %vm393 = vcmp.lt.s32.totalorder %v392, 0
        %v394 = vsub.s32 0, %v392
        %v395 = vsel %vm393, %v394, %v392
        %v396 = vclz %v395
        %v397 = vsub.s32 %v396, 2
        %vm398 = vcmp.gt.s32.totalorder 0, %v397
        %v399 = vsel %vm398, 0, %v397
        %v400 = vsub.s32 32, %v399
        %v401 = vshll.u32 %v392, %v399
        %v402 = vshrl.u32 %v384, %v400
        %v403 = vor.u32 %v401, %v402
        %v404 = vsub.s32 4294967266, %v399
        %v405 = vadd.s32 %v404, 127
        %v406 = vshll.u32 %v405, 23
        %v407 = vor.u32 4788187, %v406
        %v408 = vand.u32 2147483647, %v407
        %v410 = vcvt.s32.f32 %v403
        %v411 = vmul.f32 %v410, %v408
        %v412 = vxor.u32 %v411, 2147483648
        %v413 = vsel %vm330, %v412, %v411
        %v414 = vsub.s32 4, %v390
        %v415 = vsel %vm330, %v414, %v390
        %v416 = vsel %vm329, %v327, %v413
        %v417 = vsel %vm329, 0, %v415
        %v418 = vcosq.f32.pop %v416
        %v419 = vsinq.f32.pop %v416
        %vm420 = vweird.f32 %v327
        %v421 = vadd.s32 %v417, 3
        %v422 = vand.u32 %v421, 3
        %vm423 = vcmp.lt.s32.totalorder %v422, 2
        %vm424 = vcmp.eq.s32.totalorder %v422, 0
        %v425 = vxor.u32 %v419, 2147483648
        %v426 = vsel %vm424, %v418, %v425
        %vm427 = vcmp.eq.s32.totalorder %v422, 2
        %v428 = vxor.u32 %v418, 2147483648
        %v429 = vsel %vm427, %v428, %v419
        %v430 = vsel %vm423, %v426, %v429
        %v431 = vsel %vm420, nan, %v430
        %vm432 = vcmask 736256
        %433 = vst.msk [vmem:[%s173] sm:$0xff] %vm432, %v431
        %v434 = vand.u32 2147483647, %v327
        %vm435 = vcmp.le.f32.partialorder %v434, 0.7853982
        %vm436 = vcmp.lt.s32.totalorder %v327, 0
        %v437 = vand.u32 %v327, 2139095040
        %v438 = vshrl.u32 %v437, 23
        %v439 = vsub.s32 %v438, 127
        %v440 = vand.u32 2147483647, %v327
        %v441 = vand.u32 %v440, 8388607
        %v442 = vor.u32 %v441, 8388608
        %v443 = vsub.s32 0, %v442
        %v444 = vadd.s32 %v439, 1
        %vm445 = vcmp.gt.s32.totalorder %v444, 0
        %v446 = vsel %vm445, %v444, 0
        %v447 = vshrl.u32 %v446, 5
        %v448 = vand.u32 %v446, 31
        %v449 = vsub.s32 32, %v448
        %v450 = vshrl.u32 683565275, %v449
        %v451 = vshll.u32 683565275, %v448
        %v452 = vshrl.u32 2475754826, %v449
        %v453 = vor.u32 %v451, %v452
        %v454 = vshll.u32 2475754826, %v448
        %v455 = vshrl.u32 2131351028, %v449
        %v456 = vor.u32 %v454, %v455
        %v457 = vshll.u32 2131351028, %v448
        %v458 = vshrl.u32 2102212464, %v449
        %v459 = vor.u32 %v457, %v458
        %v460 = vshll.u32 2102212464, %v448
        %v461 = vshrl.u32 920167782, %v449
        %v462 = vor.u32 %v460, %v461
        %v463 = vshll.u32 920167782, %v448
        %v464 = vshrl.u32 1326507024, %v449
        %v465 = vor.u32 %v463, %v464
        %vm466 = vcmp.lt.s32.totalorder %v447, 1
        %vm467 = vcmp.lt.s32.totalorder %v447, 2
        %vm468 = vcmp.lt.s32.totalorder %v447, 3
        %vm469 = vcmp.lt.s32.totalorder %v447, 4
        %v470 = vsel %vm466, %v450, %v453
        %v471 = vsel %vm469, %v459, 2102212464
        %v472 = vsel %vm468, %v456, %v471
        %v473 = vsel %vm467, %v470, %v472
        %v474 = vsel %vm466, %v453, %v456
        %v475 = vsel %vm469, %v462, 920167782
        %v476 = vsel %vm468, %v459, %v475
        %v477 = vsel %vm467, %v474, %v476
        %v478 = vsel %vm466, %v456, %v459
        %v479 = vsel %vm469, %v465, 1326507024
        %v480 = vsel %vm468, %v462, %v479
        %v481 = vsel %vm467, %v478, %v480
        %v482 = vshll.u32 %v442, 8
        %v483 = vmul.u32.u64.compose %v482, %v481
        %v484 = vextract.low.u32 %v483
        %v485 = vextract.high.u32 %v483
        %v486 = vmul.u32.u64.compose %v482, %v477
        %v487 = vextract.low.u32 %v486
        %v488 = vextract.high.u32 %v486
        %v489 = vmul.u32 %v482, %v473
        %v490 = vadd.s32 %v485, %v487
        %vm491 = vc.u32 %v485, %v487
        %v492 = vadd.s32 %v488, 1
        %v493 = vsel %vm491, %v492, %v488
        %v494 = vadd.s32 %v489, %v493
        %v495 = vadd.s32 %v494, 536870912
        %v496 = vshrl.u32 %v495, 30
        %v497 = vshll.u32 %v496, 30
        %v498 = vsub.s32 %v494, %v497
        %vm499 = vcmp.lt.s32.totalorder %v498, 0
        %v500 = vsub.s32 0, %v498
        %v501 = vsel %vm499, %v500, %v498
        %v502 = vclz %v501
        %v503 = vsub.s32 %v502, 2
        %vm504 = vcmp.gt.s32.totalorder 0, %v503
        %v505 = vsel %vm504, 0, %v503
        %v506 = vsub.s32 32, %v505
        %v507 = vshll.u32 %v498, %v505
        %v508 = vshrl.u32 %v490, %v506
        %v509 = vor.u32 %v507, %v508
        %v510 = vsub.s32 4294967266, %v505
        %v511 = vadd.s32 %v510, 127
        %v512 = vshll.u32 %v511, 23
        %v513 = vor.u32 4788187, %v512
        %v514 = vand.u32 2147483647, %v513
        %v516 = vcvt.s32.f32 %v509
        %v517 = vmul.f32 %v516, %v514
        %v518 = vxor.u32 %v517, 2147483648
        %v519 = vsel %vm436, %v518, %v517
        %v520 = vsub.s32 4, %v496
        %v521 = vsel %vm436, %v520, %v496
        %v522 = vsel %vm435, %v327, %v519
        %v523 = vsel %vm435, 0, %v521
        %v524 = vcosq.f32.pop %v522
        %v525 = vsinq.f32.pop %v522
        %vm526 = vweird.f32 %v327
        %v527 = vand.u32 %v523, 3
        %vm528 = vcmp.lt.s32.totalorder %v527, 2
        %vm529 = vcmp.eq.s32.totalorder %v527, 0
        %v530 = vxor.u32 %v525, 2147483648
        %v531 = vsel %vm529, %v524, %v530
        %vm532 = vcmp.eq.s32.totalorder %v527, 2
        %v533 = vxor.u32 %v524, 2147483648
        %v534 = vsel %vm532, %v533, %v525
        %v535 = vsel %vm528, %v531, %v534
        %v536 = vsel %vm526, nan, %v535
        %538 = vrot.lane.b32.xlu0 %v536, 90
        %v539 = vpop.permute.xlu0 %538
        %vm541 = vcmask 1048272
        %542 = vst.msk [vmem:[%s173] sm:$0xff] %vm541, %v539
        %vm543 = vcmask 424960
        %544 = vst.msk [vmem:[%s173 + $0x8] sm:$0xff] %vm543, %v539
        %546 = vrot.lane.b32.xlu0 %v175, 52
        %v547 = vpop.permute.xlu0 %546
        %vm549 = vcmask 499104
        %550 = vst.msk [vmem:[%s173 + $0x8] sm:$0xff] %vm549, %v547
        %s551 = sand.u32 %s75, 1
        %s552 = scalar_lea.sflag [#allocation4], %s551
        %s553 = sand.u32 %s75, 1
        %s554 = smul.addr %s553, 16
        %s555 = scalar_lea.vmem [#allocation7], %s554
        // Predicated region
        $region37: #{tpu_custom_call.1} parent=27 // pred_check
          %p556 = pneg %p85
        $region38: #{tpu_custom_call.1} parent=27 // pred_check_branch
          %558 = sbr.rel (%p556) target = $region40
        $region39: #{tpu_custom_call.1} parent=27 // pred_region
          %s560 = ssub.s32 256, 256
          %561 = vsyncadd %s552, %s560
          %s562 = smul.addr %s20, 2
          %s563 = smul.addr %s562, 128
          %s564 = scalar_lea.hbm %s2, %s563
          %s566 = sshll.u32 %s555, 4
          %s567 = int_to_ptr.vmem [resolvable:$true] %s566
          %569 = dma.vmem_to_hbm [thread:$0]  %s567, 256, %s564, %s552
        $region40: #{tpu_custom_call.1} parent=27 // pred_fallthru
          _
      $region28: #{tpu_custom_call.1} parent=5 // pred_fallthru
        _
      %p570 = scmp.le.s32.totalorder 2, %s15
      // Predicated region
      $region41: #{tpu_custom_call.1} parent=5 // pred_check
        %p571 = pneg %p570
      $region42: #{tpu_custom_call.1} parent=5 // pred_check_branch
        %573 = sbr.rel (%p571) target = $region44
      $region43: #{tpu_custom_call.1} parent=5 // pred_region
        %s574 = ssub.s32 %s15, 2
        // Predicated region
        $region45: #{tpu_custom_call.1} parent=43 // pred_check
          %p575 = pneg %p91
        $region46: #{tpu_custom_call.1} parent=43 // pred_check_branch
          %577 = sbr.rel (%p575) target = $region48
        $region47: #{tpu_custom_call.1} parent=43 // pred_region
          %s578 = sand.u32 %s76, 1
          %s579 = scalar_lea.sflag [#allocation4], %s578
          %s580 = sand.u32 %s76, 1
          %s581 = smul.addr %s580, 16
          %s582 = scalar_lea.vmem [#allocation7], %s581
          %583 = dma.done %s579, 256
        $region48: #{tpu_custom_call.1} parent=43 // pred_fallthru
          _
      $region44: #{tpu_custom_call.1} parent=5 // pred_fallthru
        _
    $region6: #{tpu_custom_call.1} parent=1 // loop_footer
      %s19 = sadd.s32 1, %s15
    $region7: #{tpu_custom_call.1} parent=1 // loop_footer_branch
      %14 = sbr.rel target = $region3
    $region8: #{tpu_custom_call.1} parent=1 // loop_exit
      _
    %584 = vsyncpa [#allocation3], 1
    %s585 = scalar_lea.sflag [#allocation3], 1
    %586 = vsyncpa %s585, 1
    %587 = vsyncpa [#allocation6], 1
    %588 = vsyncpa [#allocation4], 1
    %s589 = scalar_lea.sflag [#allocation4], 1
    %590 = vsyncpa %s589, 1

</llo_original>
